<compile_context>
chip_gen: v7x
topology: tpu7x:2x2x1
jax: 0.10.0
libtpu: 0.0.40
codegen_flags: <defaults>
</compile_context>

<pallas_src>
import numpy as np

import jax
import jax.numpy as jnp
from jax.experimental import pallas as pl
from jax.experimental.pallas import tpu as pltpu

NUM_SLOT = 10                      # num_slot_labels
NUM_INTENT = 16                    # num_intent_labels
NUM_PRO = 3                        # ProClassifier output classes
PRO_OFF = NUM_SLOT + NUM_INTENT    # pro logits live in lanes [26, 29)
LANE = 128                         # lane-dense padded output width
TILE_B = 4                         # samples per grid step (TILE_B * 32 rows)


def _joint_heads_kernel(x_ref, pc_ref, m_ref, wsi_ref, bsi_ref, w1_ref,
                        w2_ref, b2_ref, out_ref):
    # x_ref:   (TILE_B, S, H)   sequence_output tile
    # pc_ref:  (TILE_B, 1, HM)  per-sample pro contribution  pro_vec @ W1_bot + b1
    # m_ref:   (TILE_B, 1, 1)   1.0 if sample has a pronoun token else 0.0
    # wsi_ref: (H, 128)         packed slot+intent weights (lanes [0,26))
    # bsi_ref: (1, 128)         packed slot+intent bias
    # w1_ref:  (H, HM)          ProClassifier linear1, token half ([in,out])
    # w2_ref:  (HM, 128)        ProClassifier linear2, packed into lanes [26,29)
    # b2_ref:  (1, 128)         ProClassifier linear2 bias (lanes [26,29))
    # out_ref: (TILE_B, S, 128) slot | intent | pro logits, lane-packed
    tb, s, h = x_ref.shape
    hm = w1_ref.shape[1]
    x2 = x_ref[...].reshape(tb * s, h)

    # Slot + intent heads: one lane-dense MXU matmul shared by both heads.
    si = jnp.dot(x2, wsi_ref[...], preferred_element_type=jnp.float32)
    si = si + bsi_ref[...]

    # ProClassifier: linear1(token half) + per-sample pronoun contribution,
    # ReLU, then linear2 packed into lanes [26, 29).
    h1 = jnp.dot(x2, w1_ref[...], preferred_element_type=jnp.float32)
    h1 = jnp.maximum(h1.reshape(tb, s, hm) + pc_ref[...], 0.0)
    pro = jnp.dot(h1.reshape(tb * s, hm), w2_ref[...],
                  preferred_element_type=jnp.float32)
    pro = pro + b2_ref[...]

    # Samples without a pronoun get zero pro lanes (matches the torch.zeros
    # scatter into full_referee_token_logits); slot/intent lanes unmasked.
    out = si.reshape(tb, s, LANE) + m_ref[...] * pro.reshape(tb, s, LANE)
    out_ref[...] = out.astype(out_ref.dtype)


def pack_head_params(w_slot, b_slot, w_intent, b_intent, w1, b1, w2, b2):
    """One-time packing of PyTorch-convention params (W[out,in], b[out]) into
    the kernel's [in,out] lane-dense layout. Do this at load time, not per
    forward call."""
    h = w_slot.shape[1]            # hidden size H
    hm = w1.shape[0]               # ProClassifier hidden = (2H)//2 = H

    wsi = jnp.zeros((h, LANE), jnp.float32)
    wsi = wsi.at[:, :NUM_SLOT].set(jnp.asarray(w_slot, jnp.float32).T)
    wsi = wsi.at[:, NUM_SLOT:PRO_OFF].set(jnp.asarray(w_intent, jnp.float32).T)
    bsi = jnp.zeros((1, LANE), jnp.float32)
    bsi = bsi.at[0, :NUM_SLOT].set(jnp.asarray(b_slot, jnp.float32))
    bsi = bsi.at[0, NUM_SLOT:PRO_OFF].set(jnp.asarray(b_intent, jnp.float32))

    w1_t = jnp.asarray(w1, jnp.float32).T          # (2H, HM)
    w1_top = w1_t[:h]                              # applies to the token
    w1_bot = w1_t[h:]                              # applies to the pro vector
    b1_r = jnp.asarray(b1, jnp.float32).reshape(1, hm)

    w2_p = jnp.zeros((hm, LANE), jnp.float32)
    w2_p = w2_p.at[:, PRO_OFF:PRO_OFF + NUM_PRO].set(
        jnp.asarray(w2, jnp.float32).T)
    b2_p = jnp.zeros((1, LANE), jnp.float32)
    b2_p = b2_p.at[0, PRO_OFF:PRO_OFF + NUM_PRO].set(
        jnp.asarray(b2, jnp.float32))

    return dict(wsi=wsi, bsi=bsi, w1_top=w1_top, w1_bot=w1_bot, b1=b1_r,
                w2=w2_p, b2=b2_p)


def _heads_pallas(x, pro_contrib, mask_f, params, tile_b=TILE_B):
    b, s, h = x.shape
    hm = params["w1_top"].shape[1]
    nb = pl.cdiv(b, tile_b)
    b_pad = nb * tile_b
    if b_pad != b:
        x = jnp.pad(x, ((0, b_pad - b), (0, 0), (0, 0)))
        pro_contrib = jnp.pad(pro_contrib, ((0, b_pad - b), (0, 0), (0, 0)))
        mask_f = jnp.pad(mask_f, ((0, b_pad - b), (0, 0), (0, 0)))

    out = pl.pallas_call(
        _joint_heads_kernel,
        out_shape=jax.ShapeDtypeStruct((b_pad, s, LANE), jnp.float32),
        grid_spec=pltpu.PrefetchScalarGridSpec(
            num_scalar_prefetch=0,
            grid=(nb,),
            in_specs=[
                pl.BlockSpec((tile_b, s, h), lambda i: (i, 0, 0)),   # x tile
                pl.BlockSpec((tile_b, 1, hm), lambda i: (i, 0, 0)),  # pro bias
                pl.BlockSpec((tile_b, 1, 1), lambda i: (i, 0, 0)),   # mask
                pl.BlockSpec((h, LANE), lambda i: (0, 0)),           # resident W
                pl.BlockSpec((1, LANE), lambda i: (0, 0)),
                pl.BlockSpec((h, hm), lambda i: (0, 0)),
                pl.BlockSpec((hm, LANE), lambda i: (0, 0)),
                pl.BlockSpec((1, LANE), lambda i: (0, 0)),
            ],
            out_specs=pl.BlockSpec((tile_b, s, LANE), lambda i: (i, 0, 0)),
        ),
        compiler_params=pltpu.CompilerParams(
            dimension_semantics=("parallel",)),
    )(x, pro_contrib, mask_f, params["wsi"], params["bsi"],
      params["w1_top"], params["w2"], params["b2"])
    return out[:b]


@jax.jit
def joint_bert_heads_forward(sequence_output, pro_labels_ids, params):
    """Classifier heads of JointBERTMultiIntent (eval mode).

    sequence_output: (B, S, H) f32 -- BERT encoder output.
    pro_labels_ids:  (B, S) int32  -- >0 marks the pronoun token per sample.
    Returns (slot_logits, intent_token_logits, full_referee_token_logits,
             pro_sample_mask).
    """
    # TODO(synk): the MobileBERT/BERT encoder itself is not translated; this
    # takes its sequence_output as input. Dropout layers are identity (eval).
    b, s, h = sequence_output.shape

    pro_token_mask = pro_labels_ids > 0                         # (B, S)
    has_pro = jnp.any(pro_token_mask, axis=1)                   # (B,)
    pro_idx = jnp.argmax(pro_token_mask, axis=1)                # first pro tok
    pro_vec = jnp.take_along_axis(sequence_output,
                                  pro_idx[:, None, None], axis=1)[:, 0, :]
    # Per-sample ProClassifier linear1 contribution of the pronoun vector
    # (tiny B x H x H matmul, done once per call instead of per token).
    pro_contrib = (jnp.dot(pro_vec, params["w1_bot"],
                           precision=jax.lax.Precision.HIGHEST)
                   + params["b1"])[:, None, :]                  # (B, 1, HM)
    mask_f = has_pro.astype(jnp.float32)[:, None, None]         # (B, 1, 1)

    out = _heads_pallas(sequence_output, pro_contrib, mask_f, params)
    slot_logits = out[..., :NUM_SLOT]
    intent_token_logits = out[..., NUM_SLOT:PRO_OFF]
    full_referee_token_logits = out[..., PRO_OFF:PRO_OFF + NUM_PRO]
    return (slot_logits, intent_token_logits, full_referee_token_logits,
            has_pro)


if __name__ == "__main__":
    key = jax.random.PRNGKey(0)
    keys = jax.random.split(key, 9)

    B = 8           # batch
    S = 32          # max_seq_len from the module
    H = 32          # toy hidden size (real MobileBERT: 512)

    # Simulated BERT encoder output.
    sequence_output = jax.random.normal(keys[0], (B, S, H), dtype=jnp.float32)

    # pro_labels_ids: samples 0, 2, 5 each have exactly one pronoun token.
    pro_labels_ids = jnp.zeros((B, S), jnp.int32)
    pro_labels_ids = pro_labels_ids.at[0, 3].set(1)
    pro_labels_ids = pro_labels_ids.at[2, 7].set(1)
    pro_labels_ids = pro_labels_ids.at[5, 1].set(1)

    # PyTorch-convention parameters (W[out, in], b[out]).
    def uni(k, shape, fan_in):
        bound = 1.0 / (fan_in ** 0.5)
        return jax.random.uniform(k, shape, jnp.float32, -bound, bound)

    w_slot = uni(keys[1], (NUM_SLOT, H), H)
    b_slot = uni(keys[2], (NUM_SLOT,), H)
    w_intent = uni(keys[3], (NUM_INTENT, H), H)
    b_intent = uni(keys[4], (NUM_INTENT,), H)
    w1 = uni(keys[5], (H, 2 * H), 2 * H)       # ProClassifier linear1
    b1 = uni(keys[6], (H,), 2 * H)
    w2 = uni(keys[7], (NUM_PRO, H), H)         # ProClassifier linear2
    b2 = uni(keys[8], (NUM_PRO,), H)

    packed = pack_head_params(w_slot, b_slot, w_intent, b_intent,
                              w1, b1, w2, b2)

    slot_logits, intent_logits, full_referee, has_pro = jax.block_until_ready(
        joint_bert_heads_forward(sequence_output, pro_labels_ids, packed))

    # Compact referee logits (only samples containing a pronoun token),
    # mirroring the PyTorch `referee_token_logits` tensor (dynamic shape ->
    # gathered host-side).
    referee_token_logits = np.asarray(full_referee)[np.asarray(has_pro)]

    # ---- plain-JAX reference (mirrors the PyTorch forward, eval mode) ----
    hi = jax.lax.Precision.HIGHEST
    slot_ref = jnp.dot(sequence_output, w_slot.T, precision=hi) + b_slot
    intent_ref = jnp.dot(sequence_output, w_intent.T, precision=hi) + b_intent
    mask = pro_labels_ids > 0
    has_pro_ref = jnp.any(mask, axis=1)
    pro_idx = jnp.argmax(mask, axis=1)
    pro_vec = jnp.take_along_axis(sequence_output, pro_idx[:, None, None], 1)
    x_cat = jnp.concatenate(
        [sequence_output, jnp.broadcast_to(pro_vec, sequence_output.shape)],
        axis=-1)
    h_ref = jnp.maximum(jnp.dot(x_cat, w1.T, precision=hi) + b1, 0.0)
    pro_ref = jnp.dot(h_ref, w2.T, precision=hi) + b2
    full_ref = jnp.where(has_pro_ref[:, None, None], pro_ref, 0.0)

    assert slot_logits.shape == (B, S, NUM_SLOT)
    assert intent_logits.shape == (B, S, NUM_INTENT)
    assert full_referee.shape == (B, S, NUM_PRO)
    assert referee_token_logits.shape == (int(has_pro.sum()), S, NUM_PRO)
    assert bool(jnp.all(has_pro == has_pro_ref))
    assert jnp.allclose(slot_logits, slot_ref, atol=5e-4, rtol=5e-4)
    assert jnp.allclose(intent_logits, intent_ref, atol=5e-4, rtol=5e-4)
    assert jnp.allclose(full_referee, full_ref, atol=5e-4, rtol=5e-4)

    print("KERNEL_OK")
</pallas_src>

<mosaic_0001>
module attributes {stable_mosaic.version = 11 : i64} {
  func.func @_joint_heads_kernel(%arg0: i32, %arg1: memref<4x32x32xf32, #tpu.memory_space<vmem>>, %arg2: memref<4x1x32xf32, #tpu.memory_space<vmem>>, %arg3: memref<4x1x1xf32, #tpu.memory_space<vmem>>, %arg4: memref<32x128xf32, #tpu.memory_space<vmem>>, %arg5: memref<1x128xf32, #tpu.memory_space<vmem>>, %arg6: memref<32x32xf32, #tpu.memory_space<vmem>>, %arg7: memref<32x128xf32, #tpu.memory_space<vmem>>, %arg8: memref<1x128xf32, #tpu.memory_space<vmem>>, %arg9: memref<4x32x128xf32, #tpu.memory_space<vmem>>) attributes {dimension_semantics = [#tpu.dimension_semantics<parallel>], iteration_bounds = array<i64: 2>, scalar_prefetch = 0 : i64, scratch_operands = 0 : i64, tpu.core_type = #tpu.core_type<tc>, window_params = [{transform_indices = @transform_0, window_bounds = array<i64: 4, 32, 32>}, {transform_indices = @transform_1, window_bounds = array<i64: 4, 1, 32>}, {transform_indices = @transform_2, window_bounds = array<i64: 4, 1, 1>}, {pipeline_mode = #tpu.pipeline_mode<synchronous>, transform_indices = @transform_3, window_bounds = array<i64: 32, 128>}, {pipeline_mode = #tpu.pipeline_mode<synchronous>, transform_indices = @transform_4, window_bounds = array<i64: 1, 128>}, {pipeline_mode = #tpu.pipeline_mode<synchronous>, transform_indices = @transform_5, window_bounds = array<i64: 32, 32>}, {pipeline_mode = #tpu.pipeline_mode<synchronous>, transform_indices = @transform_6, window_bounds = array<i64: 32, 128>}, {pipeline_mode = #tpu.pipeline_mode<synchronous>, transform_indices = @transform_7, window_bounds = array<i64: 1, 128>}, {transform_indices = @transform_8, window_bounds = array<i64: 4, 32, 128>}]} {
    %c0 = arith.constant 0 : index
    %c0_0 = arith.constant 0 : index
    %c0_1 = arith.constant 0 : index
    %0 = vector.load %arg1[%c0, %c0_0, %c0_1] : memref<4x32x32xf32, #tpu.memory_space<vmem>>, vector<4x32x32xf32>
    %1 = vector.shape_cast %0 : vector<4x32x32xf32> to vector<128x32xf32>
    %c0_2 = arith.constant 0 : index
    %c0_3 = arith.constant 0 : index
    %2 = vector.load %arg4[%c0_2, %c0_3] : memref<32x128xf32, #tpu.memory_space<vmem>>, vector<32x128xf32>
    %cst = arith.constant dense<0.000000e+00> : vector<128x128xf32>
    %3 = tpu.matmul %1, %2, %cst {dimension_numbers = #tpu.dot_dimension_numbers<[1], [0], [0], [1], [0, 0, 1, 1], [], []>} : vector<128x32xf32>, vector<32x128xf32>, vector<128x128xf32> -> vector<128x128xf32>
    %c0_4 = arith.constant 0 : index
    %c0_5 = arith.constant 0 : index
    %4 = vector.load %arg5[%c0_4, %c0_5] : memref<1x128xf32, #tpu.memory_space<vmem>>, vector<1x128xf32>
    %5 = vector.broadcast %4 : vector<1x128xf32> to vector<128x128xf32>
    %6 = arith.addf %3, %5 : vector<128x128xf32>
    %c0_6 = arith.constant 0 : index
    %c0_7 = arith.constant 0 : index
    %7 = vector.load %arg6[%c0_6, %c0_7] : memref<32x32xf32, #tpu.memory_space<vmem>>, vector<32x32xf32>
    %cst_8 = arith.constant dense<0.000000e+00> : vector<128x32xf32>
    %8 = tpu.matmul %1, %7, %cst_8 {dimension_numbers = #tpu.dot_dimension_numbers<[1], [0], [0], [1], [0, 0, 1, 1], [], []>} : vector<128x32xf32>, vector<32x32xf32>, vector<128x32xf32> -> vector<128x32xf32>
    %9 = vector.shape_cast %8 : vector<128x32xf32> to vector<4x32x32xf32>
    %c0_9 = arith.constant 0 : index
    %c0_10 = arith.constant 0 : index
    %c0_11 = arith.constant 0 : index
    %10 = vector.load %arg2[%c0_9, %c0_10, %c0_11] : memref<4x1x32xf32, #tpu.memory_space<vmem>>, vector<4x1x32xf32>
    %11 = vector.broadcast %10 : vector<4x1x32xf32> to vector<4x32x32xf32>
    %12 = arith.addf %9, %11 : vector<4x32x32xf32>
    %cst_12 = arith.constant 0.000000e+00 : f32
    %13 = vector.broadcast %cst_12 : f32 to vector<4x32x32xf32>
    %14 = arith.maximumf %12, %13 : vector<4x32x32xf32>
    %15 = vector.shape_cast %14 : vector<4x32x32xf32> to vector<128x32xf32>
    %c0_13 = arith.constant 0 : index
    %c0_14 = arith.constant 0 : index
    %16 = vector.load %arg7[%c0_13, %c0_14] : memref<32x128xf32, #tpu.memory_space<vmem>>, vector<32x128xf32>
    %cst_15 = arith.constant dense<0.000000e+00> : vector<128x128xf32>
    %17 = tpu.matmul %15, %16, %cst_15 {dimension_numbers = #tpu.dot_dimension_numbers<[1], [0], [0], [1], [0, 0, 1, 1], [], []>} : vector<128x32xf32>, vector<32x128xf32>, vector<128x128xf32> -> vector<128x128xf32>
    %c0_16 = arith.constant 0 : index
    %c0_17 = arith.constant 0 : index
    %18 = vector.load %arg8[%c0_16, %c0_17] : memref<1x128xf32, #tpu.memory_space<vmem>>, vector<1x128xf32>
    %19 = vector.broadcast %18 : vector<1x128xf32> to vector<128x128xf32>
    %20 = arith.addf %17, %19 : vector<128x128xf32>
    %21 = vector.shape_cast %6 : vector<128x128xf32> to vector<4x32x128xf32>
    %c0_18 = arith.constant 0 : index
    %c0_19 = arith.constant 0 : index
    %c0_20 = arith.constant 0 : index
    %22 = vector.load %arg3[%c0_18, %c0_19, %c0_20] : memref<4x1x1xf32, #tpu.memory_space<vmem>>, vector<4x1x1xf32>
    %23 = vector.shape_cast %20 : vector<128x128xf32> to vector<4x32x128xf32>
    %24 = vector.broadcast %22 : vector<4x1x1xf32> to vector<4x32x128xf32>
    %25 = arith.mulf %24, %23 : vector<4x32x128xf32>
    %26 = arith.addf %21, %25 : vector<4x32x128xf32>
    %c0_21 = arith.constant 0 : index
    %c0_22 = arith.constant 0 : index
    %c0_23 = arith.constant 0 : index
    %27 = vector.load %arg9[%c0_21, %c0_22, %c0_23] : memref<4x32x128xf32, #tpu.memory_space<vmem>>, vector<4x32x128xf32>
    tpu.vector_store %arg9[%c0_21, %c0_22, %c0_23], %26 {strides = array<i32>} : memref<4x32x128xf32, #tpu.memory_space<vmem>>, vector<4x32x128xf32>,
    return
  }
  func.func @transform_0(%arg0: i32) -> (i32, i32, i32) {
    %c0_i32 = arith.constant 0 : i32
    %c0_i32_0 = arith.constant 0 : i32
    %c0_i32_1 = arith.constant 0 : i32
    return %arg0, %c0_i32, %c0_i32_0 : i32, i32, i32
  }
  func.func @transform_1(%arg0: i32) -> (i32, i32, i32) {
    %c0_i32 = arith.constant 0 : i32
    %c0_i32_0 = arith.constant 0 : i32
    %c0_i32_1 = arith.constant 0 : i32
    return %arg0, %c0_i32, %c0_i32_0 : i32, i32, i32
  }
  func.func @transform_2(%arg0: i32) -> (i32, i32, i32) {
    %c0_i32 = arith.constant 0 : i32
    %c0_i32_0 = arith.constant 0 : i32
    %c0_i32_1 = arith.constant 0 : i32
    return %arg0, %c0_i32, %c0_i32_0 : i32, i32, i32
  }
  func.func @transform_3(%arg0: i32) -> (i32, i32) {
    %c0_i32 = arith.constant 0 : i32
    %c0_i32_0 = arith.constant 0 : i32
    %c0_i32_1 = arith.constant 0 : i32
    return %c0_i32, %c0_i32_0 : i32, i32
  }
  func.func @transform_4(%arg0: i32) -> (i32, i32) {
    %c0_i32 = arith.constant 0 : i32
    %c0_i32_0 = arith.constant 0 : i32
    %c0_i32_1 = arith.constant 0 : i32
    return %c0_i32, %c0_i32_0 : i32, i32
  }
  func.func @transform_5(%arg0: i32) -> (i32, i32) {
    %c0_i32 = arith.constant 0 : i32
    %c0_i32_0 = arith.constant 0 : i32
    %c0_i32_1 = arith.constant 0 : i32
    return %c0_i32, %c0_i32_0 : i32, i32
  }
  func.func @transform_6(%arg0: i32) -> (i32, i32) {
    %c0_i32 = arith.constant 0 : i32
    %c0_i32_0 = arith.constant 0 : i32
    %c0_i32_1 = arith.constant 0 : i32
    return %c0_i32, %c0_i32_0 : i32, i32
  }
  func.func @transform_7(%arg0: i32) -> (i32, i32) {
    %c0_i32 = arith.constant 0 : i32
    %c0_i32_0 = arith.constant 0 : i32
    %c0_i32_1 = arith.constant 0 : i32
    return %c0_i32, %c0_i32_0 : i32, i32
  }
  func.func @transform_8(%arg0: i32) -> (i32, i32, i32) {
    %c0_i32 = arith.constant 0 : i32
    %c0_i32_0 = arith.constant 0 : i32
    %c0_i32_1 = arith.constant 0 : i32
    return %arg0, %c0_i32, %c0_i32_0 : i32, i32, i32
  }
}

</mosaic_0001>

<llo_original>
// kernel: joint_bert_heads_forward.1
$region0: #{joint_bert_heads_forward.1}
  #allocation0 [shape = 'u32[]', space=smem, size = 0x4, offset = 0x4, fixed_abs, tag = 'smem constant byte address 0x4 - core index']
  #allocation1 [shape = 'u32[144,128]{1,0:T(1,128)}', space=vmem, size = 0x12000, scoped, tag = 'internal scratch']
  %s0 = inlined_call_operand.vmem [shape: f32[8,32,32], index: 0, kind: input, shape index: {}]
  %s1 = inlined_call_operand.vmem [shape: f32[8,1,32], index: 1, kind: input, shape index: {}]
  %s2 = inlined_call_operand.vmem [shape: f32[8,1,1], index: 2, kind: input, shape index: {}]
  %s3 = inlined_call_operand.vmem [shape: f32[32,128], index: 3, kind: input, shape index: {}]
  %s4 = inlined_call_operand.vmem [shape: f32[1,128], index: 4, kind: input, shape index: {}]
  %s5 = inlined_call_operand.hbm [shape: f32[32,32], index: 5, kind: input, shape index: {}]
  %s6 = inlined_call_operand.hbm [shape: f32[32,128], index: 6, kind: input, shape index: {}]
  %s7 = inlined_call_operand.vmem [shape: f32[1,128], index: 7, kind: input, shape index: {}]
  %s8 = inlined_call_operand.vmem [shape: f32[8,32,128], index: 8, kind: output, shape index: {}]
  %s9 = sld [smem:[#allocation0]]
  $region73: #{joint_bert_heads_forward.1} parent=0
    _
  %s11 = ssub.s32 1, %s9
  %s12 = scalar_select 0, %s11, %s9
  $region1: #{joint_bert_heads_forward.1} parent=0
    #allocation2 [shape = 'u8[16384]{0}', space=vmem, size = 0x4000, scoped, tag = 'input window, operand 5, single buffered']
    #allocation3 [shape = 's32[2]{0}', space=sflag, size = 0x8, scoped, tag = 'scoped memory for joint_bert_heads_forward.1']
    #allocation4 [shape = 'u8[16384]{0}', space=vmem, size = 0x4000, scoped, tag = 'input window, operand 6, single buffered']
    #allocation5 [shape = 's32[1]{0}', space=sflag, size = 0x4, scoped, tag = 'scoped memory for joint_bert_heads_forward.1']
    %13 = vsyncpa [#allocation3], 0
    %14 = vsyncpa [#allocation5], 0
    loop: start=0, step=1, limit=4
    $region2: #{joint_bert_heads_forward.1} parent=1 // loop_pre_header
      _
    $region3: #{joint_bert_heads_forward.1} parent=1 // loop_header
      %s16 = sphi 0, %s20
      %p17 = scmp.ge.s32.totalorder %s16, 4
      %s26 = sphi 0, %s28
      %s29 = sphi 0, %s26
      %s30 = sphi 0, %s29
      %s46 = sphi 0, %s30
      %s52 = sphi 0, %s54
      %s55 = sphi 0, %s52
      %s56 = sphi 0, %s55
      %s72 = sphi 0, %s56
      %s78 = sphi 0, %s80
      %s81 = sphi 0, %s78
      %s82 = sphi 0, %s81
      %s98 = sphi 0, %s82
      %s102 = sphi 0, %s102
      %s104 = sphi 0, %s102
      %s105 = sphi 0, %s104
      %s119 = sphi 0, %s105
      %s123 = sphi 0, %s123
      %s125 = sphi 0, %s123
      %s126 = sphi 0, %s125
      %s140 = sphi 0, %s126
      %s144 = sphi 0, %s144
      %s146 = sphi 0, %s144
      %s147 = sphi 0, %s146
      %s161 = sphi 0, %s147
      %s165 = sphi 0, %s165
      %s167 = sphi 0, %s165
      %s168 = sphi 0, %s167
      %s182 = sphi 0, %s168
      %s186 = sphi 0, %s186
      %s188 = sphi 0, %s186
      %s189 = sphi 0, %s188
      %s203 = sphi 0, %s189
      %s209 = sphi 0, %s211
      %s212 = sphi 0, %s209
      %s213 = sphi 0, %s212
      %s229 = sphi 0, %s213
    $region4: #{joint_bert_heads_forward.1} parent=1 // loop_header_branch
      %19 = sbr.rel (%p17) target = $region8
    $region5: #{joint_bert_heads_forward.1} parent=1 // loop_body
      %s21 = ssub.s32 %s16, 1
      %s22 = ssub.s32 %s16, 2
      %s23 = sadd.s32 %s16, 1
      %s24 = ssub.s32 %s16, %s23
      %p25 = scmp.eq.s32.totalorder %s24, 0
      %s27 = sadd.s32 %s26, 1
      %s28 = scalar_select %p25, %s26, %s27
      %p31 = pneg %p25
      %p32 = scmp.eq.s32.totalorder %s16, 1
      %p33 = por %p31, %p32
      %p34 = scmp.ne.s32.totalorder %s26, %s29
      %p35 = scmp.eq.s32.totalorder %s16, 0
      %p36 = por %p34, %p35
      %p37 = scmp.ne.s32.totalorder %s26, %s29
      %p38 = scmp.eq.s32.totalorder %s21, 1
      %p39 = por %p37, %p38
      %p40 = scmp.ne.s32.totalorder %s29, %s30
      %p41 = scmp.eq.s32.totalorder %s21, 0
      %p42 = por %p40, %p41
      %p43 = scmp.ne.s32.totalorder %s29, %s30
      %p44 = scmp.eq.s32.totalorder %s22, 1
      %p45 = por %p43, %p44
      %p47 = scmp.ne.s32.totalorder %s30, %s46
      %p48 = scmp.eq.s32.totalorder %s22, 0
      %p49 = por %p47, %p48
      %s50 = ssub.s32 %s16, %s23
      %p51 = scmp.eq.s32.totalorder %s50, 0
      %s53 = sadd.s32 %s52, 1
      %s54 = scalar_select %p51, %s52, %s53
      %p57 = pneg %p51
      %p58 = scmp.eq.s32.totalorder %s16, 1
      %p59 = por %p57, %p58
      %p60 = scmp.ne.s32.totalorder %s52, %s55
      %p61 = scmp.eq.s32.totalorder %s16, 0
      %p62 = por %p60, %p61
      %p63 = scmp.ne.s32.totalorder %s52, %s55
      %p64 = scmp.eq.s32.totalorder %s21, 1
      %p65 = por %p63, %p64
      %p66 = scmp.ne.s32.totalorder %s55, %s56
      %p67 = scmp.eq.s32.totalorder %s21, 0
      %p68 = por %p66, %p67
      %p69 = scmp.ne.s32.totalorder %s55, %s56
      %p70 = scmp.eq.s32.totalorder %s22, 1
      %p71 = por %p69, %p70
      %p73 = scmp.ne.s32.totalorder %s56, %s72
      %p74 = scmp.eq.s32.totalorder %s22, 0
      %p75 = por %p73, %p74
      %s76 = ssub.s32 %s16, %s23
      %p77 = scmp.eq.s32.totalorder %s76, 0
      %s79 = sadd.s32 %s78, 1
      %s80 = scalar_select %p77, %s78, %s79
      %p83 = pneg %p77
      %p84 = scmp.eq.s32.totalorder %s16, 1
      %p85 = por %p83, %p84
      %p86 = scmp.ne.s32.totalorder %s78, %s81
      %p87 = scmp.eq.s32.totalorder %s16, 0
      %p88 = por %p86, %p87
      %p89 = scmp.ne.s32.totalorder %s78, %s81
      %p90 = scmp.eq.s32.totalorder %s21, 1
      %p91 = por %p89, %p90
      %p92 = scmp.ne.s32.totalorder %s81, %s82
      %p93 = scmp.eq.s32.totalorder %s21, 0
      %p94 = por %p92, %p93
      %p95 = scmp.ne.s32.totalorder %s81, %s82
      %p96 = scmp.eq.s32.totalorder %s22, 1
      %p97 = por %p95, %p96
      %p99 = scmp.ne.s32.totalorder %s82, %s98
      %p100 = scmp.eq.s32.totalorder %s22, 0
      %p101 = por %p99, %p100
      %s103 = sadd.s32 %s102, 1
      %p106 = scmp.eq.s32.totalorder %s16, 1
      %p107 = scmp.ne.s32.totalorder %s102, %s104
      %p108 = scmp.eq.s32.totalorder %s16, 0
      %p109 = por %p107, %p108
      %p110 = scmp.ne.s32.totalorder %s102, %s104
      %p111 = scmp.eq.s32.totalorder %s21, 1
      %p112 = por %p110, %p111
      %p113 = scmp.ne.s32.totalorder %s104, %s105
      %p114 = scmp.eq.s32.totalorder %s21, 0
      %p115 = por %p113, %p114
      %p116 = scmp.ne.s32.totalorder %s104, %s105
      %p117 = scmp.eq.s32.totalorder %s22, 1
      %p118 = por %p116, %p117
      %p120 = scmp.ne.s32.totalorder %s105, %s119
      %p121 = scmp.eq.s32.totalorder %s22, 0
      %p122 = por %p120, %p121
      %s124 = sadd.s32 %s123, 1
      %p127 = scmp.eq.s32.totalorder %s16, 1
      %p128 = scmp.ne.s32.totalorder %s123, %s125
      %p129 = scmp.eq.s32.totalorder %s16, 0
      %p130 = por %p128, %p129
      %p131 = scmp.ne.s32.totalorder %s123, %s125
      %p132 = scmp.eq.s32.totalorder %s21, 1
      %p133 = por %p131, %p132
      %p134 = scmp.ne.s32.totalorder %s125, %s126
      %p135 = scmp.eq.s32.totalorder %s21, 0
      %p136 = por %p134, %p135
      %p137 = scmp.ne.s32.totalorder %s125, %s126
      %p138 = scmp.eq.s32.totalorder %s22, 1
      %p139 = por %p137, %p138
      %p141 = scmp.ne.s32.totalorder %s126, %s140
      %p142 = scmp.eq.s32.totalorder %s22, 0
      %p143 = por %p141, %p142
      %s145 = sadd.s32 %s144, 1
      %p148 = scmp.eq.s32.totalorder %s16, 1
      %p149 = scmp.ne.s32.totalorder %s144, %s146
      %p150 = scmp.eq.s32.totalorder %s16, 0
      %p151 = por %p149, %p150
      %p152 = scmp.ne.s32.totalorder %s144, %s146
      %p153 = scmp.eq.s32.totalorder %s21, 1
      %p154 = por %p152, %p153
      %p155 = scmp.ne.s32.totalorder %s146, %s147
      %p156 = scmp.eq.s32.totalorder %s21, 0
      %p157 = por %p155, %p156
      %p158 = scmp.ne.s32.totalorder %s146, %s147
      %p159 = scmp.eq.s32.totalorder %s22, 1
      %p160 = por %p158, %p159
      %p162 = scmp.ne.s32.totalorder %s147, %s161
      %p163 = scmp.eq.s32.totalorder %s22, 0
      %p164 = por %p162, %p163
      %s166 = sadd.s32 %s165, 1
      %p169 = scmp.eq.s32.totalorder %s16, 1
      %p170 = scmp.ne.s32.totalorder %s165, %s167
      %p171 = scmp.eq.s32.totalorder %s16, 0
      %p172 = por %p170, %p171
      %p173 = scmp.ne.s32.totalorder %s165, %s167
      %p174 = scmp.eq.s32.totalorder %s21, 1
      %p175 = por %p173, %p174
      %p176 = scmp.ne.s32.totalorder %s167, %s168
      %p177 = scmp.eq.s32.totalorder %s21, 0
      %p178 = por %p176, %p177
      %p179 = scmp.ne.s32.totalorder %s167, %s168
      %p180 = scmp.eq.s32.totalorder %s22, 1
      %p181 = por %p179, %p180
      %p183 = scmp.ne.s32.totalorder %s168, %s182
      %p184 = scmp.eq.s32.totalorder %s22, 0
      %p185 = por %p183, %p184
      %s187 = sadd.s32 %s186, 1
      %p190 = scmp.eq.s32.totalorder %s16, 1
      %p191 = scmp.ne.s32.totalorder %s186, %s188
      %p192 = scmp.eq.s32.totalorder %s16, 0
      %p193 = por %p191, %p192
      %p194 = scmp.ne.s32.totalorder %s186, %s188
      %p195 = scmp.eq.s32.totalorder %s21, 1
      %p196 = por %p194, %p195
      %p197 = scmp.ne.s32.totalorder %s188, %s189
      %p198 = scmp.eq.s32.totalorder %s21, 0
      %p199 = por %p197, %p198
      %p200 = scmp.ne.s32.totalorder %s188, %s189
      %p201 = scmp.eq.s32.totalorder %s22, 1
      %p202 = por %p200, %p201
      %p204 = scmp.ne.s32.totalorder %s189, %s203
      %p205 = scmp.eq.s32.totalorder %s22, 0
      %p206 = por %p204, %p205
      %s207 = ssub.s32 %s16, %s23
      %p208 = scmp.eq.s32.totalorder %s207, 0
      %s210 = sadd.s32 %s209, 1
      %s211 = scalar_select %p208, %s209, %s210
      %p214 = pneg %p208
      %p215 = scmp.eq.s32.totalorder %s16, 1
      %p216 = por %p214, %p215
      %p217 = scmp.ne.s32.totalorder %s209, %s212
      %p218 = scmp.eq.s32.totalorder %s16, 0
      %p219 = por %p217, %p218
      %p220 = scmp.ne.s32.totalorder %s209, %s212
      %p221 = scmp.eq.s32.totalorder %s21, 1
      %p222 = por %p220, %p221
      %p223 = scmp.ne.s32.totalorder %s212, %s213
      %p224 = scmp.eq.s32.totalorder %s21, 0
      %p225 = por %p223, %p224
      %p226 = scmp.ne.s32.totalorder %s212, %s213
      %p227 = scmp.eq.s32.totalorder %s22, 1
      %p228 = por %p226, %p227
      %p230 = scmp.ne.s32.totalorder %s213, %s229
      %p231 = scmp.eq.s32.totalorder %s22, 0
      %p232 = por %p230, %p231
      %p233 = scmp.le.s32.totalorder 1, %s16
      %p234 = scmp.lt.s32.totalorder %s16, 3
      %p235 = pnand %p233, %p234
      %p236 = pneg %p235
      // Predicated region
      $region9: #{joint_bert_heads_forward.1} parent=5 // pred_check
        _
      $region10: #{joint_bert_heads_forward.1} parent=5 // pred_check_branch
        %238 = sbr.rel (%p235) target = $region12
      $region11: #{joint_bert_heads_forward.1} parent=5 // pred_region
        %s239 = ssub.s32 %s16, 1
        // Predicated region
        $region13: #{joint_bert_heads_forward.1} parent=11 // pred_check
          %p240 = pneg %p115
        $region14: #{joint_bert_heads_forward.1} parent=11 // pred_check_branch
          %242 = sbr.rel (%p240) target = $region16
        $region15: #{joint_bert_heads_forward.1} parent=11 // pred_region
          _
        $region16: #{joint_bert_heads_forward.1} parent=11 // pred_fallthru
          _
        // Predicated region
        $region17: #{joint_bert_heads_forward.1} parent=11 // pred_check
          %p243 = pneg %p136
        $region18: #{joint_bert_heads_forward.1} parent=11 // pred_check_branch
          %245 = sbr.rel (%p243) target = $region20
        $region19: #{joint_bert_heads_forward.1} parent=11 // pred_region
          _
        $region20: #{joint_bert_heads_forward.1} parent=11 // pred_fallthru
          _
        // Predicated region
        $region21: #{joint_bert_heads_forward.1} parent=11 // pred_check
          %p246 = pneg %p157
        $region22: #{joint_bert_heads_forward.1} parent=11 // pred_check_branch
          %248 = sbr.rel (%p246) target = $region24
        $region23: #{joint_bert_heads_forward.1} parent=11 // pred_region
          %s250 = ssub.s32 512, 512
          %251 = vsyncadd [#allocation3], %s250
          %s252 = sshll.u32 [#allocation2], 4
          %s253 = int_to_ptr.vmem [resolvable:$true] %s252
          %258 = dma.hbm_to_vmem [thread:$0]  %s5, 512, %s253, [#allocation3], 128, 128, 8
        $region24: #{joint_bert_heads_forward.1} parent=11 // pred_fallthru
          _
        // Predicated region
        $region25: #{joint_bert_heads_forward.1} parent=11 // pred_check
          %p259 = pneg %p178
        $region26: #{joint_bert_heads_forward.1} parent=11 // pred_check_branch
          %261 = sbr.rel (%p259) target = $region28
        $region27: #{joint_bert_heads_forward.1} parent=11 // pred_region
          %s263 = ssub.s32 512, 512
          %264 = vsyncadd [#allocation5], %s263
          %s265 = sshll.u32 [#allocation4], 4
          %s266 = int_to_ptr.vmem [resolvable:$true] %s265
          %271 = dma.hbm_to_vmem [thread:$0]  %s6, 512, %s266, [#allocation5], 128, 128, 8
        $region28: #{joint_bert_heads_forward.1} parent=11 // pred_fallthru
          _
        // Predicated region
        $region29: #{joint_bert_heads_forward.1} parent=11 // pred_check
          %p272 = pneg %p199
        $region30: #{joint_bert_heads_forward.1} parent=11 // pred_check_branch
          %274 = sbr.rel (%p272) target = $region32
        $region31: #{joint_bert_heads_forward.1} parent=11 // pred_region
          _
        $region32: #{joint_bert_heads_forward.1} parent=11 // pred_fallthru
          _
      $region12: #{joint_bert_heads_forward.1} parent=5 // pred_fallthru
        _
      %p275 = scmp.lt.s32.totalorder %s16, 2
      // Predicated region
      $region33: #{joint_bert_heads_forward.1} parent=5 // pred_check
        %p276 = pneg %p275
      $region34: #{joint_bert_heads_forward.1} parent=5 // pred_check_branch
        %278 = sbr.rel (%p276) target = $region36
      $region35: #{joint_bert_heads_forward.1} parent=5 // pred_region
        // Predicated region
        $region37: #{joint_bert_heads_forward.1} parent=35 // pred_check
          %p279 = pneg %p36
        $region38: #{joint_bert_heads_forward.1} parent=35 // pred_check_branch
          %281 = sbr.rel (%p279) target = $region40
        $region39: #{joint_bert_heads_forward.1} parent=35 // pred_region
          %s282 = smul.u32 4, %s16
          %p283 = scmp.lt.s32.totalorder %s282, 7
          %s284 = scalar_select %p283, %s282, 7
          %s285 = smul.addr %s284, 4
          %s286 = smul.addr %s285, 8
          %s287 = scalar_lea.vmem %s0, %s286
          %s288 = smul.u32 4, %s16
        $region40: #{joint_bert_heads_forward.1} parent=35 // pred_fallthru
          _
        // Predicated region
        $region41: #{joint_bert_heads_forward.1} parent=35 // pred_check
          %p289 = pneg %p62
        $region42: #{joint_bert_heads_forward.1} parent=35 // pred_check_branch
          %291 = sbr.rel (%p289) target = $region44
        $region43: #{joint_bert_heads_forward.1} parent=35 // pred_region
          %s292 = smul.u32 4, %s16
          %p293 = scmp.lt.s32.totalorder %s292, 7
          %s294 = scalar_select %p293, %s292, 7
          %s295 = scalar_lea.vmem %s1, %s294
          %s296 = smul.u32 4, %s16
        $region44: #{joint_bert_heads_forward.1} parent=35 // pred_fallthru
          _
        // Predicated region
        $region45: #{joint_bert_heads_forward.1} parent=35 // pred_check
          %p297 = pneg %p88
        $region46: #{joint_bert_heads_forward.1} parent=35 // pred_check_branch
          %299 = sbr.rel (%p297) target = $region48
        $region47: #{joint_bert_heads_forward.1} parent=35 // pred_region
          %s300 = smul.u32 4, %s16
          %p301 = scmp.lt.s32.totalorder %s300, 7
          %s302 = scalar_select %p301, %s300, 7
          %s303 = scalar_lea.vmem %s2, %s302
          %s304 = smul.u32 4, %s16
        $region48: #{joint_bert_heads_forward.1} parent=35 // pred_fallthru
          _
      $region36: #{joint_bert_heads_forward.1} parent=5 // pred_fallthru
        _
      %p305 = scmp.le.s32.totalorder 1, %s16
      %p306 = scmp.lt.s32.totalorder %s16, 3
      %p307 = pnand %p305, %p306
      %p308 = pneg %p307
      // Predicated region
      $region49: #{joint_bert_heads_forward.1} parent=5 // pred_check
        _
      $region50: #{joint_bert_heads_forward.1} parent=5 // pred_check_branch
        %310 = sbr.rel (%p307) target = $region52
      $region51: #{joint_bert_heads_forward.1} parent=5 // pred_region
        %s311 = ssub.s32 %s16, 1
        // Predicated region
        $region53: #{joint_bert_heads_forward.1} parent=51 // pred_check
          %p312 = pneg %p157
        $region54: #{joint_bert_heads_forward.1} parent=51 // pred_check_branch
          %314 = sbr.rel (%p312) target = $region56
        $region55: #{joint_bert_heads_forward.1} parent=51 // pred_region
          %315 = dma.done [#allocation3], 512
        $region56: #{joint_bert_heads_forward.1} parent=51 // pred_fallthru
          _
        // Predicated region
        $region57: #{joint_bert_heads_forward.1} parent=51 // pred_check
          %p316 = pneg %p178
        $region58: #{joint_bert_heads_forward.1} parent=51 // pred_check_branch
          %318 = sbr.rel (%p316) target = $region60
        $region59: #{joint_bert_heads_forward.1} parent=51 // pred_region
          %319 = dma.done [#allocation5], 512
        $region60: #{joint_bert_heads_forward.1} parent=51 // pred_fallthru
          _
        %s320 = smul.u32 4, %s21
        %p321 = scmp.lt.s32.totalorder %s320, 7
        %s322 = scalar_select %p321, %s320, 7
        %s323 = smul.addr %s322, 4
        %s324 = smul.addr %s323, 8
        %s325 = scalar_lea.vmem %s0, %s324
        %p326 = pneg %p42
        %p327 = pneg %p39
        %s328 = smul.u32 4, %s21
        %p329 = scmp.lt.s32.totalorder %s328, 7
        %s330 = scalar_select %p329, %s328, 7
        %s331 = scalar_lea.vmem %s1, %s330
        %p332 = pneg %p68
        %p333 = pneg %p65
        %s334 = smul.u32 4, %s21
        %p335 = scmp.lt.s32.totalorder %s334, 7
        %s336 = scalar_select %p335, %s334, 7
        %s337 = scalar_lea.vmem %s2, %s336
        %p338 = pneg %p94
        %p339 = pneg %p91
        %p340 = pneg %p115
        %p341 = pneg %p112
        %p342 = pneg %p136
        %p343 = pneg %p133
        %p344 = pneg %p157
        %p345 = pneg %p154
        %p346 = pneg %p178
        %p347 = pneg %p175
        %p348 = pneg %p199
        %p349 = pneg %p196
        %p350 = pneg %p225
        %p351 = pneg %p222
        %s352 = smul.u32 4, %s21
        %p353 = scmp.lt.s32.totalorder %s352, 7
        %s354 = scalar_select %p353, %s352, 7
        %s355 = smul.addr %s354, 4
        %s356 = smul.addr %s355, 8
        %s357 = scalar_lea.vmem %s8, %s356
        %s358 = smul.u32 4, %s21
        %p359 = scmp.lt.s32.totalorder %s358, 7
        %s360 = scalar_select %p359, %s358, 7
        %s361 = smul.addr %s360, 4
        %s362 = smul.addr %s361, 8
        %s363 = scalar_lea.vmem %s0, %s362
        %s364 = smul.u32 4, %s21
        %s365 = smul.u32 4, %s21
        %p366 = scmp.lt.s32.totalorder %s365, 7
        %s367 = scalar_select %p366, %s365, 7
        %s368 = scalar_lea.vmem %s1, %s367
        %s369 = smul.u32 4, %s21
        %s370 = smul.u32 4, %s21
        %p371 = scmp.lt.s32.totalorder %s370, 7
        %s372 = scalar_select %p371, %s370, 7
        %s373 = scalar_lea.vmem %s2, %s372
        %s374 = smul.u32 4, %s21
        %s375 = smul.u32 4, %s21
        %p376 = scmp.lt.s32.totalorder %s375, 7
        %s377 = scalar_select %p376, %s375, 7
        %s378 = smul.addr %s377, 4
        %s379 = smul.addr %s378, 8
        %s380 = scalar_lea.vmem %s8, %s379
        %s381 = smul.u32 4, %s21
        %v382 = vld [vmem:[%s363] sm:$0xff]
        %v383 = vld [vmem:[%s363 + $0x8] sm:$0xff]
        %v384 = vld [vmem:[%s363 + $0x10] sm:$0xff]
        %v385 = vld [vmem:[%s363 + $0x18] sm:$0xff]
        %v386 = vld [vmem:[%s363 + $0x20] sm:$0xff]
        %v387 = vld [vmem:[%s363 + $0x28] sm:$0xff]
        %v388 = vld [vmem:[%s363 + $0x30] sm:$0xff]
        %v389 = vld [vmem:[%s363 + $0x38] sm:$0xff]
        %v390 = vld [vmem:[%s363 + $0x40] sm:$0xff]
        %v391 = vld [vmem:[%s363 + $0x48] sm:$0xff]
        %v392 = vld [vmem:[%s363 + $0x50] sm:$0xff]
        %v393 = vld [vmem:[%s363 + $0x58] sm:$0xff]
        %v394 = vld [vmem:[%s363 + $0x60] sm:$0xff]
        %v395 = vld [vmem:[%s363 + $0x68] sm:$0xff]
        %v396 = vld [vmem:[%s363 + $0x70] sm:$0xff]
        %v397 = vld [vmem:[%s363 + $0x78] sm:$0xff]
        %v398 = vld [vmem:[%s3] sm:$0xff]
        %v399 = vld [vmem:[%s3 + $0x8] sm:$0xff]
        %v400 = vld [vmem:[%s3 + $0x10] sm:$0xff]
        %v401 = vld [vmem:[%s3 + $0x18] sm:$0xff]
        %v402 = vld [vmem:[%s4] sm:$0x1]
        %v404 = vlaneseq
        %v405 = vshrl.u32 %v404, 7
        %v406 = vsub.s32 0, %v405
        %v407 = vrot.slane %v402, %v406
        %vm409 = vcmask 261120
        %v411 = vsel %vm409, %v382, 0
        %v414 = vsel %vm409, %v383, 0
        %v417 = vsel %vm409, %v384, 0
        %v420 = vsel %vm409, %v385, 0
        %v423 = vsel %vm409, %v386, 0
        %v426 = vsel %vm409, %v387, 0
        %v429 = vsel %vm409, %v388, 0
        %v432 = vsel %vm409, %v389, 0
        %v435 = vsel %vm409, %v390, 0
        %v438 = vsel %vm409, %v391, 0
        %v441 = vsel %vm409, %v392, 0
        %v444 = vsel %vm409, %v393, 0
        %v447 = vsel %vm409, %v394, 0
        %v450 = vsel %vm409, %v395, 0
        %v453 = vsel %vm409, %v396, 0
        %v456 = vsel %vm409, %v397, 0
        %458 = vmatprep.subr.mxu0 0.0
        %459 = vmatpush1.msra.mxu0 %v398
        %460 = vmatprep.subr.mxu0 0.0
        %461 = vmatpush1.msra.mxu0 %v399
        %462 = vmatprep.subr.mxu0 0.0
        %463 = vmatpush1.msra.mxu0 %v400
        %464 = vmatprep.subr.mxu0 0.0
        %465 = vmatpush1.msra.mxu0 %v401
        %466 = vmatprep.subr.mxu0 0.0
        %467 = vmatpush1.msra.mxu0 0.0
        %468 = vmatprep.subr.mxu0 0.0
        %469 = vmatpush1.msra.mxu0 0.0
        %470 = vmatprep.subr.mxu0 0.0
        %471 = vmatpush1.msra.mxu0 0.0
        %472 = vmatprep.subr.mxu0 0.0
        %473 = vmatpush1.msra.mxu0 0.0
        %474 = vmatprep.subr.mxu0 0.0
        %475 = vmatpush1.msra.mxu0 0.0
        %476 = vmatprep.subr.mxu0 0.0
        %477 = vmatpush1.msra.mxu0 0.0
        %478 = vmatprep.subr.mxu0 0.0
        %479 = vmatpush1.msra.mxu0 0.0
        %480 = vmatprep.subr.mxu0 0.0
        %481 = vmatpush1.msra.mxu0 0.0
        %482 = vmatprep.subr.mxu0 0.0
        %483 = vmatpush1.msra.mxu0 0.0
        %484 = vmatprep.subr.mxu0 0.0
        %485 = vmatpush1.msra.mxu0 0.0
        %486 = vmatprep.subr.mxu0 0.0
        %487 = vmatpush1.msra.mxu0 0.0
        %488 = vmatprep.subr.mxu0 0.0
        %489 = vmatpush1.msra.mxu0 0.0
        %490 = vmatprep.subr.mxu0 0.0
        %491 = vmatpush1.msra.mxu0 0.0
        %492 = vmatprep.subr.mxu0 0.0
        %493 = vmatpush1.msra.mxu0 0.0
        %494 = vmatprep.subr.mxu0 0.0
        %495 = vmatpush1.msra.mxu0 0.0
        %496 = vmatprep.subr.mxu0 0.0
        %497 = vmatpush1.msra.mxu0 0.0
        %498 = vmatprep.subr.mxu0 0.0
        %499 = vmatpush1.msra.mxu0 0.0
        %500 = vmatprep.subr.mxu0 0.0
        %501 = vmatpush1.msra.mxu0 0.0
        %502 = vmatprep.subr.mxu0 0.0
        %503 = vmatpush1.msra.mxu0 0.0
        %504 = vmatprep.subr.mxu0 0.0
        %505 = vmatpush1.msra.mxu0 0.0
        %506 = vmatprep.subr.mxu0 0.0
        %507 = vmatpush1.msra.mxu0 0.0
        %508 = vmatprep.subr.mxu0 0.0
        %509 = vmatpush1.msra.mxu0 0.0
        %510 = vmatprep.subr.mxu0 0.0
        %511 = vmatpush1.msra.mxu0 0.0
        %512 = vmatprep.subr.mxu0 0.0
        %513 = vmatpush1.msra.mxu0 0.0
        %514 = vmatprep.subr.mxu0 0.0
        %515 = vmatpush1.msra.mxu0 0.0
        %516 = vmatprep.subr.mxu0 0.0
        %517 = vmatpush1.msra.mxu0 0.0
        %518 = vmatprep.subr.mxu0 0.0
        %519 = vmatpush1.msra.mxu0 0.0
        %520 = vmatprep.subr.mxu0 0.0
        %521 = vmatpush1.msra.mxu0 0.0
        %522 = vmatprep.mubr.f32.mxu0 0.0
        %523 = vmatmul.mubr.f32.gmra.mrb[0].mxu0 %v411
        %v524 = vpop.f32.mrb[0].mxu0
        %v525 = vadd.f32 %v407, %v524
        %v526 = vpop.f32.mrb[0].mxu0
        %527 = vmatprep.mubr.f32.mxu0 0.0
        %528 = vmatmul.mubr.f32.gmra.mrb[0].mxu0 %v414
        %v529 = vpop.f32.mrb[0].mxu0
        %v530 = vadd.f32 %v407, %v529
        %v531 = vpop.f32.mrb[0].mxu0
        %532 = vmatprep.mubr.f32.mxu0 0.0
        %533 = vmatmul.mubr.f32.gmra.mrb[0].mxu0 %v417
        %v534 = vpop.f32.mrb[0].mxu0
        %v535 = vadd.f32 %v407, %v534
        %v536 = vpop.f32.mrb[0].mxu0
        %537 = vmatprep.mubr.f32.mxu0 0.0
        %538 = vmatmul.mubr.f32.gmra.mrb[0].mxu0 %v420
        %v539 = vpop.f32.mrb[0].mxu0
        %v540 = vadd.f32 %v407, %v539
        %v541 = vpop.f32.mrb[0].mxu0
        %542 = vmatprep.mubr.f32.mxu0 0.0
        %543 = vmatmul.mubr.f32.gmra.mrb[0].mxu0 %v423
        %v544 = vpop.f32.mrb[0].mxu0
        %v545 = vadd.f32 %v407, %v544
        %v546 = vpop.f32.mrb[0].mxu0
        %547 = vmatprep.mubr.f32.mxu0 0.0
        %548 = vmatmul.mubr.f32.gmra.mrb[0].mxu0 %v426
        %v549 = vpop.f32.mrb[0].mxu0
        %v550 = vadd.f32 %v407, %v549
        %v551 = vpop.f32.mrb[0].mxu0
        %552 = vmatprep.mubr.f32.mxu0 0.0
        %553 = vmatmul.mubr.f32.gmra.mrb[0].mxu0 %v429
        %v554 = vpop.f32.mrb[0].mxu0
        %v555 = vadd.f32 %v407, %v554
        %v556 = vpop.f32.mrb[0].mxu0
        %557 = vmatprep.mubr.f32.mxu0 0.0
        %558 = vmatmul.mubr.f32.gmra.mrb[0].mxu0 %v432
        %v559 = vpop.f32.mrb[0].mxu0
        %v560 = vadd.f32 %v407, %v559
        %v561 = vpop.f32.mrb[0].mxu0
        %562 = vmatprep.mubr.f32.mxu0 0.0
        %563 = vmatmul.mubr.f32.gmra.mrb[0].mxu0 %v435
        %v564 = vpop.f32.mrb[0].mxu0
        %v565 = vadd.f32 %v407, %v564
        %v566 = vpop.f32.mrb[0].mxu0
        %567 = vmatprep.mubr.f32.mxu0 0.0
        %568 = vmatmul.mubr.f32.gmra.mrb[0].mxu0 %v438
        %v569 = vpop.f32.mrb[0].mxu0
        %v570 = vadd.f32 %v407, %v569
        %v571 = vpop.f32.mrb[0].mxu0
        %572 = vmatprep.mubr.f32.mxu0 0.0
        %573 = vmatmul.mubr.f32.gmra.mrb[0].mxu0 %v441
        %v574 = vpop.f32.mrb[0].mxu0
        %v575 = vadd.f32 %v407, %v574
        %v576 = vpop.f32.mrb[0].mxu0
        %577 = vmatprep.mubr.f32.mxu0 0.0
        %578 = vmatmul.mubr.f32.gmra.mrb[0].mxu0 %v444
        %v579 = vpop.f32.mrb[0].mxu0
        %v580 = vadd.f32 %v407, %v579
        %v581 = vpop.f32.mrb[0].mxu0
        %582 = vmatprep.mubr.f32.mxu0 0.0
        %583 = vmatmul.mubr.f32.gmra.mrb[0].mxu0 %v447
        %v584 = vpop.f32.mrb[0].mxu0
        %v585 = vadd.f32 %v407, %v584
        %v586 = vpop.f32.mrb[0].mxu0
        %587 = vmatprep.mubr.f32.mxu0 0.0
        %588 = vmatmul.mubr.f32.gmra.mrb[0].mxu0 %v450
        %v589 = vpop.f32.mrb[0].mxu0
        %v590 = vadd.f32 %v407, %v589
        %v591 = vpop.f32.mrb[0].mxu0
        %592 = vmatprep.mubr.f32.mxu0 0.0
        %593 = vmatmul.mubr.f32.gmra.mrb[0].mxu0 %v453
        %v594 = vpop.f32.mrb[0].mxu0
        %v595 = vadd.f32 %v407, %v594
        %v596 = vpop.f32.mrb[0].mxu0
        %597 = vmatprep.mubr.f32.mxu0 0.0
        %598 = vmatmul.mubr.f32.gmra.mrb[0].mxu0 %v456
        %v599 = vpop.f32.mrb[0].mxu0
        %v600 = vadd.f32 %v407, %v599
        %v601 = vpop.f32.mrb[0].mxu0
        %602 = vdwg.mxu0
        %v603 = vld [vmem:[#allocation2] sm:$0xff]
        %v604 = vld [vmem:[#allocation2 + $0x8] sm:$0xff]
        %v605 = vld [vmem:[#allocation2 + $0x10] sm:$0xff]
        %v606 = vld [vmem:[#allocation2 + $0x18] sm:$0xff]
        %607 = vmatprep.subr.mxu0 0.0
        %608 = vmatpush1.msra.mxu0 %v603
        %609 = vmatprep.subr.mxu0 0.0
        %610 = vmatpush1.msra.mxu0 %v604
        %611 = vmatprep.subr.mxu0 0.0
        %612 = vmatpush1.msra.mxu0 %v605
        %613 = vmatprep.subr.mxu0 0.0
        %614 = vmatpush1.msra.mxu0 %v606
        %615 = vmatprep.subr.mxu0 0.0
        %616 = vmatpush1.msra.mxu0 0.0
        %617 = vmatprep.subr.mxu0 0.0
        %618 = vmatpush1.msra.mxu0 0.0
        %619 = vmatprep.subr.mxu0 0.0
        %620 = vmatpush1.msra.mxu0 0.0
        %621 = vmatprep.subr.mxu0 0.0
        %622 = vmatpush1.msra.mxu0 0.0
        %623 = vmatprep.subr.mxu0 0.0
        %624 = vmatpush1.msra.mxu0 0.0
        %625 = vmatprep.subr.mxu0 0.0
        %626 = vmatpush1.msra.mxu0 0.0
        %627 = vmatprep.subr.mxu0 0.0
        %628 = vmatpush1.msra.mxu0 0.0
        %629 = vmatprep.subr.mxu0 0.0
        %630 = vmatpush1.msra.mxu0 0.0
        %631 = vmatprep.subr.mxu0 0.0
        %632 = vmatpush1.msra.mxu0 0.0
        %633 = vmatprep.subr.mxu0 0.0
        %634 = vmatpush1.msra.mxu0 0.0
        %635 = vmatprep.subr.mxu0 0.0
        %636 = vmatpush1.msra.mxu0 0.0
        %637 = vmatprep.subr.mxu0 0.0
        %638 = vmatpush1.msra.mxu0 0.0
        %639 = vmatprep.subr.mxu0 0.0
        %640 = vmatpush1.msra.mxu0 0.0
        %641 = vmatprep.subr.mxu0 0.0
        %642 = vmatpush1.msra.mxu0 0.0
        %643 = vmatprep.subr.mxu0 0.0
        %644 = vmatpush1.msra.mxu0 0.0
        %645 = vmatprep.subr.mxu0 0.0
        %646 = vmatpush1.msra.mxu0 0.0
        %647 = vmatprep.subr.mxu0 0.0
        %648 = vmatpush1.msra.mxu0 0.0
        %649 = vmatprep.subr.mxu0 0.0
        %650 = vmatpush1.msra.mxu0 0.0
        %651 = vmatprep.subr.mxu0 0.0
        %652 = vmatpush1.msra.mxu0 0.0
        %653 = vmatprep.subr.mxu0 0.0
        %654 = vmatpush1.msra.mxu0 0.0
        %655 = vmatprep.subr.mxu0 0.0
        %656 = vmatpush1.msra.mxu0 0.0
        %657 = vmatprep.subr.mxu0 0.0
        %658 = vmatpush1.msra.mxu0 0.0
        %659 = vmatprep.subr.mxu0 0.0
        %660 = vmatpush1.msra.mxu0 0.0
        %661 = vmatprep.subr.mxu0 0.0
        %662 = vmatpush1.msra.mxu0 0.0
        %663 = vmatprep.subr.mxu0 0.0
        %664 = vmatpush1.msra.mxu0 0.0
        %665 = vmatprep.subr.mxu0 0.0
        %666 = vmatpush1.msra.mxu0 0.0
        %667 = vmatprep.subr.mxu0 0.0
        %668 = vmatpush1.msra.mxu0 0.0
        %669 = vmatprep.subr.mxu0 0.0
        %670 = vmatpush1.msra.mxu0 0.0
        %671 = vmatprep.mubr.f32.mxu0 0.0
        %672 = vmatmul.mubr.f32.gmra.mrb[0].mxu0 %v411
        %v673 = vpop.f32.mrb[0].mxu0
        %v674 = vadd.f32 0.0, %v673
        %v675 = vpop.f32.mrb[0].mxu0
        %676 = vmatprep.mubr.f32.mxu0 0.0
        %677 = vmatmul.mubr.f32.gmra.mrb[0].mxu0 %v414
        %v678 = vpop.f32.mrb[0].mxu0
        %v679 = vadd.f32 0.0, %v678
        %v680 = vpop.f32.mrb[0].mxu0
        %681 = vmatprep.mubr.f32.mxu0 0.0
        %682 = vmatmul.mubr.f32.gmra.mrb[0].mxu0 %v417
        %v683 = vpop.f32.mrb[0].mxu0
        %v684 = vadd.f32 0.0, %v683
        %v685 = vpop.f32.mrb[0].mxu0
        %686 = vmatprep.mubr.f32.mxu0 0.0
        %687 = vmatmul.mubr.f32.gmra.mrb[0].mxu0 %v420
        %v688 = vpop.f32.mrb[0].mxu0
        %v689 = vadd.f32 0.0, %v688
        %v690 = vpop.f32.mrb[0].mxu0
        %691 = vmatprep.mubr.f32.mxu0 0.0
        %692 = vmatmul.mubr.f32.gmra.mrb[0].mxu0 %v423
        %v693 = vpop.f32.mrb[0].mxu0
        %v694 = vadd.f32 0.0, %v693
        %v695 = vpop.f32.mrb[0].mxu0
        %696 = vmatprep.mubr.f32.mxu0 0.0
        %697 = vmatmul.mubr.f32.gmra.mrb[0].mxu0 %v426
        %v698 = vpop.f32.mrb[0].mxu0
        %v699 = vadd.f32 0.0, %v698
        %v700 = vpop.f32.mrb[0].mxu0
        %701 = vmatprep.mubr.f32.mxu0 0.0
        %702 = vmatmul.mubr.f32.gmra.mrb[0].mxu0 %v429
        %v703 = vpop.f32.mrb[0].mxu0
        %v704 = vadd.f32 0.0, %v703
        %v705 = vpop.f32.mrb[0].mxu0
        %706 = vmatprep.mubr.f32.mxu0 0.0
        %707 = vmatmul.mubr.f32.gmra.mrb[0].mxu0 %v432
        %v708 = vpop.f32.mrb[0].mxu0
        %v709 = vadd.f32 0.0, %v708
        %v710 = vpop.f32.mrb[0].mxu0
        %711 = vmatprep.mubr.f32.mxu0 0.0
        %712 = vmatmul.mubr.f32.gmra.mrb[0].mxu0 %v435
        %v713 = vpop.f32.mrb[0].mxu0
        %v714 = vadd.f32 0.0, %v713
        %v715 = vpop.f32.mrb[0].mxu0
        %716 = vmatprep.mubr.f32.mxu0 0.0
        %717 = vmatmul.mubr.f32.gmra.mrb[0].mxu0 %v438
        %v718 = vpop.f32.mrb[0].mxu0
        %v719 = vadd.f32 0.0, %v718
        %v720 = vpop.f32.mrb[0].mxu0
        %721 = vmatprep.mubr.f32.mxu0 0.0
        %722 = vmatmul.mubr.f32.gmra.mrb[0].mxu0 %v441
        %v723 = vpop.f32.mrb[0].mxu0
        %v724 = vadd.f32 0.0, %v723
        %v725 = vpop.f32.mrb[0].mxu0
        %726 = vmatprep.mubr.f32.mxu0 0.0
        %727 = vmatmul.mubr.f32.gmra.mrb[0].mxu0 %v444
        %v728 = vpop.f32.mrb[0].mxu0
        %v729 = vadd.f32 0.0, %v728
        %v730 = vpop.f32.mrb[0].mxu0
        %731 = vmatprep.mubr.f32.mxu0 0.0
        %732 = vmatmul.mubr.f32.gmra.mrb[0].mxu0 %v447
        %v733 = vpop.f32.mrb[0].mxu0
        %v734 = vadd.f32 0.0, %v733
        %v735 = vpop.f32.mrb[0].mxu0
        %736 = vmatprep.mubr.f32.mxu0 0.0
        %737 = vmatmul.mubr.f32.gmra.mrb[0].mxu0 %v450
        %v738 = vpop.f32.mrb[0].mxu0
        %v739 = vadd.f32 0.0, %v738
        %v740 = vpop.f32.mrb[0].mxu0
        %741 = vmatprep.mubr.f32.mxu0 0.0
        %742 = vmatmul.mubr.f32.gmra.mrb[0].mxu0 %v453
        %v743 = vpop.f32.mrb[0].mxu0
        %v744 = vadd.f32 0.0, %v743
        %v745 = vpop.f32.mrb[0].mxu0
        %746 = vmatprep.mubr.f32.mxu0 0.0
        %747 = vmatmul.mubr.f32.gmra.mrb[0].mxu0 %v456
        %v748 = vpop.f32.mrb[0].mxu0
        %v749 = vadd.f32 0.0, %v748
        %v750 = vpop.f32.mrb[0].mxu0
        %751 = vdwg.mxu0
        %v752 = vld [vmem:[%s368] sm:$0x1]
        %v753 = vld [vmem:[%s368 + $0x1] sm:$0x1]
        %v754 = vld [vmem:[%s368 + $0x2] sm:$0x1]
        %v755 = vld [vmem:[%s368 + $0x3] sm:$0x1]
        %v760 = vlaneseq
        %v761 = vshrl.u32 %v760, 7
        %v762 = vsub.s32 0, %v761
        %v763 = vrot.slane %v752, %v762
        %v764 = vlaneseq
        %v765 = vshrl.u32 %v764, 7
        %v766 = vsub.s32 0, %v765
        %v767 = vrot.slane %v753, %v766
        %v768 = vlaneseq
        %v769 = vshrl.u32 %v768, 7
        %v770 = vsub.s32 0, %v769
        %v771 = vrot.slane %v754, %v770
        %v772 = vlaneseq
        %v773 = vshrl.u32 %v772, 7
        %v774 = vsub.s32 0, %v773
        %v775 = vrot.slane %v755, %v774
        %v780 = vadd.f32 %v674, %v763
        %v781 = vadd.f32 %v679, %v763
        %v782 = vadd.f32 %v684, %v763
        %v783 = vadd.f32 %v689, %v763
        %v784 = vadd.f32 %v694, %v767
        %v785 = vadd.f32 %v699, %v767
        %v786 = vadd.f32 %v704, %v767
        %v787 = vadd.f32 %v709, %v767
        %v788 = vadd.f32 %v714, %v771
        %v789 = vadd.f32 %v719, %v771
        %v790 = vadd.f32 %v724, %v771
        %v791 = vadd.f32 %v729, %v771
        %v792 = vadd.f32 %v734, %v775
        %v793 = vadd.f32 %v739, %v775
        %v794 = vadd.f32 %v744, %v775
        %v795 = vadd.f32 %v749, %v775
        %v796 = vmax.f32 %v780, 0.0
        %v797 = vmax.f32 %v781, 0.0
        %v798 = vmax.f32 %v782, 0.0
        %v799 = vmax.f32 %v783, 0.0
        %v800 = vmax.f32 %v784, 0.0
        %v801 = vmax.f32 %v785, 0.0
        %v802 = vmax.f32 %v786, 0.0
        %v803 = vmax.f32 %v787, 0.0
        %v804 = vmax.f32 %v788, 0.0
        %v805 = vmax.f32 %v789, 0.0
        %v806 = vmax.f32 %v790, 0.0
        %v807 = vmax.f32 %v791, 0.0
        %v808 = vmax.f32 %v792, 0.0
        %v809 = vmax.f32 %v793, 0.0
        %v810 = vmax.f32 %v794, 0.0
        %v811 = vmax.f32 %v795, 0.0
        %v812 = vld [vmem:[#allocation4] sm:$0xff]
        %v813 = vld [vmem:[#allocation4 + $0x8] sm:$0xff]
        %v814 = vld [vmem:[#allocation4 + $0x10] sm:$0xff]
        %v815 = vld [vmem:[#allocation4 + $0x18] sm:$0xff]
        %v816 = vld [vmem:[%s7] sm:$0x1]
        %v818 = vlaneseq
        %v819 = vshrl.u32 %v818, 7
        %v820 = vsub.s32 0, %v819
        %v821 = vrot.slane %v816, %v820
        %v824 = vsel %vm409, %v796, 0
        %v827 = vsel %vm409, %v797, 0
        %v830 = vsel %vm409, %v798, 0
        %v833 = vsel %vm409, %v799, 0
        %v836 = vsel %vm409, %v800, 0
        %v839 = vsel %vm409, %v801, 0
        %v842 = vsel %vm409, %v802, 0
        %v845 = vsel %vm409, %v803, 0
        %v848 = vsel %vm409, %v804, 0
        %v851 = vsel %vm409, %v805, 0
        %v854 = vsel %vm409, %v806, 0
        %v857 = vsel %vm409, %v807, 0
        %v860 = vsel %vm409, %v808, 0
        %v863 = vsel %vm409, %v809, 0
        %v866 = vsel %vm409, %v810, 0
        %v869 = vsel %vm409, %v811, 0
        %871 = vmatprep.subr.mxu0 0.0
        %872 = vmatpush1.msra.mxu0 %v812
        %873 = vmatprep.subr.mxu0 0.0
        %874 = vmatpush1.msra.mxu0 %v813
        %875 = vmatprep.subr.mxu0 0.0
        %876 = vmatpush1.msra.mxu0 %v814
        %877 = vmatprep.subr.mxu0 0.0
        %878 = vmatpush1.msra.mxu0 %v815
        %879 = vmatprep.subr.mxu0 0.0
        %880 = vmatpush1.msra.mxu0 0.0
        %881 = vmatprep.subr.mxu0 0.0
        %882 = vmatpush1.msra.mxu0 0.0
        %883 = vmatprep.subr.mxu0 0.0
        %884 = vmatpush1.msra.mxu0 0.0
        %885 = vmatprep.subr.mxu0 0.0
        %886 = vmatpush1.msra.mxu0 0.0
        %887 = vmatprep.subr.mxu0 0.0
        %888 = vmatpush1.msra.mxu0 0.0
        %889 = vmatprep.subr.mxu0 0.0
        %890 = vmatpush1.msra.mxu0 0.0
        %891 = vmatprep.subr.mxu0 0.0
        %892 = vmatpush1.msra.mxu0 0.0
        %893 = vmatprep.subr.mxu0 0.0
        %894 = vmatpush1.msra.mxu0 0.0
        %895 = vmatprep.subr.mxu0 0.0
        %896 = vmatpush1.msra.mxu0 0.0
        %897 = vmatprep.subr.mxu0 0.0
        %898 = vmatpush1.msra.mxu0 0.0
        %899 = vmatprep.subr.mxu0 0.0
        %900 = vmatpush1.msra.mxu0 0.0
        %901 = vmatprep.subr.mxu0 0.0
        %902 = vmatpush1.msra.mxu0 0.0
        %903 = vmatprep.subr.mxu0 0.0
        %904 = vmatpush1.msra.mxu0 0.0
        %905 = vmatprep.subr.mxu0 0.0
        %906 = vmatpush1.msra.mxu0 0.0
        %907 = vmatprep.subr.mxu0 0.0
        %908 = vmatpush1.msra.mxu0 0.0
        %909 = vmatprep.subr.mxu0 0.0
        %910 = vmatpush1.msra.mxu0 0.0
        %911 = vmatprep.subr.mxu0 0.0
        %912 = vmatpush1.msra.mxu0 0.0
        %913 = vmatprep.subr.mxu0 0.0
        %914 = vmatpush1.msra.mxu0 0.0
        %915 = vmatprep.subr.mxu0 0.0
        %916 = vmatpush1.msra.mxu0 0.0
        %917 = vmatprep.subr.mxu0 0.0
        %918 = vmatpush1.msra.mxu0 0.0
        %919 = vmatprep.subr.mxu0 0.0
        %920 = vmatpush1.msra.mxu0 0.0
        %921 = vmatprep.subr.mxu0 0.0
        %922 = vmatpush1.msra.mxu0 0.0
        %923 = vmatprep.subr.mxu0 0.0
        %924 = vmatpush1.msra.mxu0 0.0
        %925 = vmatprep.subr.mxu0 0.0
        %926 = vmatpush1.msra.mxu0 0.0
        %927 = vmatprep.subr.mxu0 0.0
        %928 = vmatpush1.msra.mxu0 0.0
        %929 = vmatprep.subr.mxu0 0.0
        %930 = vmatpush1.msra.mxu0 0.0
        %931 = vmatprep.subr.mxu0 0.0
        %932 = vmatpush1.msra.mxu0 0.0
        %933 = vmatprep.subr.mxu0 0.0
        %934 = vmatpush1.msra.mxu0 0.0
        %935 = vmatprep.mubr.f32.mxu0 0.0
        %936 = vmatmul.mubr.f32.gmra.mrb[0].mxu0 %v824
        %v937 = vpop.f32.mrb[0].mxu0
        %v938 = vadd.f32 %v821, %v937
        %v939 = vpop.f32.mrb[0].mxu0
        %940 = vmatprep.mubr.f32.mxu0 0.0
        %941 = vmatmul.mubr.f32.gmra.mrb[0].mxu0 %v827
        %v942 = vpop.f32.mrb[0].mxu0
        %v943 = vadd.f32 %v821, %v942
        %v944 = vpop.f32.mrb[0].mxu0
        %945 = vmatprep.mubr.f32.mxu0 0.0
        %946 = vmatmul.mubr.f32.gmra.mrb[0].mxu0 %v830
        %v947 = vpop.f32.mrb[0].mxu0
        %v948 = vadd.f32 %v821, %v947
        %v949 = vpop.f32.mrb[0].mxu0
        %950 = vmatprep.mubr.f32.mxu0 0.0
        %951 = vmatmul.mubr.f32.gmra.mrb[0].mxu0 %v833
        %v952 = vpop.f32.mrb[0].mxu0
        %v953 = vadd.f32 %v821, %v952
        %v954 = vpop.f32.mrb[0].mxu0
        %955 = vmatprep.mubr.f32.mxu0 0.0
        %956 = vmatmul.mubr.f32.gmra.mrb[0].mxu0 %v836
        %v957 = vpop.f32.mrb[0].mxu0
        %v958 = vadd.f32 %v821, %v957
        %v959 = vpop.f32.mrb[0].mxu0
        %960 = vmatprep.mubr.f32.mxu0 0.0
        %961 = vmatmul.mubr.f32.gmra.mrb[0].mxu0 %v839
        %v962 = vpop.f32.mrb[0].mxu0
        %v963 = vadd.f32 %v821, %v962
        %v964 = vpop.f32.mrb[0].mxu0
        %965 = vmatprep.mubr.f32.mxu0 0.0
        %966 = vmatmul.mubr.f32.gmra.mrb[0].mxu0 %v842
        %v967 = vpop.f32.mrb[0].mxu0
        %v968 = vadd.f32 %v821, %v967
        %v969 = vpop.f32.mrb[0].mxu0
        %970 = vmatprep.mubr.f32.mxu0 0.0
        %971 = vmatmul.mubr.f32.gmra.mrb[0].mxu0 %v845
        %v972 = vpop.f32.mrb[0].mxu0
        %v973 = vadd.f32 %v821, %v972
        %v974 = vpop.f32.mrb[0].mxu0
        %975 = vmatprep.mubr.f32.mxu0 0.0
        %976 = vmatmul.mubr.f32.gmra.mrb[0].mxu0 %v848
        %v977 = vpop.f32.mrb[0].mxu0
        %v978 = vadd.f32 %v821, %v977
        %v979 = vpop.f32.mrb[0].mxu0
        %980 = vmatprep.mubr.f32.mxu0 0.0
        %981 = vmatmul.mubr.f32.gmra.mrb[0].mxu0 %v851
        %v982 = vpop.f32.mrb[0].mxu0
        %v983 = vadd.f32 %v821, %v982
        %v984 = vpop.f32.mrb[0].mxu0
        %985 = vmatprep.mubr.f32.mxu0 0.0
        %986 = vmatmul.mubr.f32.gmra.mrb[0].mxu0 %v854
        %v987 = vpop.f32.mrb[0].mxu0
        %v988 = vadd.f32 %v821, %v987
        %v989 = vpop.f32.mrb[0].mxu0
        %990 = vmatprep.mubr.f32.mxu0 0.0
        %991 = vmatmul.mubr.f32.gmra.mrb[0].mxu0 %v857
        %v992 = vpop.f32.mrb[0].mxu0
        %v993 = vadd.f32 %v821, %v992
        %v994 = vpop.f32.mrb[0].mxu0
        %995 = vmatprep.mubr.f32.mxu0 0.0
        %996 = vmatmul.mubr.f32.gmra.mrb[0].mxu0 %v860
        %v997 = vpop.f32.mrb[0].mxu0
        %v998 = vadd.f32 %v821, %v997
        %v999 = vpop.f32.mrb[0].mxu0
        %1000 = vmatprep.mubr.f32.mxu0 0.0
        %1001 = vmatmul.mubr.f32.gmra.mrb[0].mxu0 %v863
        %v1002 = vpop.f32.mrb[0].mxu0
        %v1003 = vadd.f32 %v821, %v1002
        %v1004 = vpop.f32.mrb[0].mxu0
        %1005 = vmatprep.mubr.f32.mxu0 0.0
        %1006 = vmatmul.mubr.f32.gmra.mrb[0].mxu0 %v866
        %v1007 = vpop.f32.mrb[0].mxu0
        %v1008 = vadd.f32 %v821, %v1007
        %v1009 = vpop.f32.mrb[0].mxu0
        %1010 = vmatprep.mubr.f32.mxu0 0.0
        %1011 = vmatmul.mubr.f32.gmra.mrb[0].mxu0 %v869
        %v1012 = vpop.f32.mrb[0].mxu0
        %v1013 = vadd.f32 %v821, %v1012
        %v1014 = vpop.f32.mrb[0].mxu0
        %1015 = vdwg.mxu0
        %v1016 = vld [vmem:[%s373] sm:$0x1]
        %v1017 = vld [vmem:[%s373 + $0x1] sm:$0x1]
        %v1018 = vld [vmem:[%s373 + $0x2] sm:$0x1]
        %v1019 = vld [vmem:[%s373 + $0x3] sm:$0x1]
        %v1024 = vlaneseq
        %v1025 = vshrl.u32 %v1024, 7
        %v1026 = vsub.s32 0, %v1025
        %v1027 = vrot.slane %v1016, %v1026
        %v1028 = vlaneseq
        %v1029 = vshrl.u32 %v1028, 7
        %v1030 = vsub.s32 0, %v1029
        %v1031 = vrot.slane %v1017, %v1030
        %v1032 = vlaneseq
        %v1033 = vshrl.u32 %v1032, 7
        %v1034 = vsub.s32 0, %v1033
        %v1035 = vrot.slane %v1018, %v1034
        %v1036 = vlaneseq
        %v1037 = vshrl.u32 %v1036, 7
        %v1038 = vsub.s32 0, %v1037
        %v1039 = vrot.slane %v1019, %v1038
        %1040 = vset.pattern.permute.xlu0 0
        %1041 = vperm.xlu0 %1040, %v1027
        %v1042 = vpop.permute.xlu0 %1041
        %1044 = vset.pattern.permute.xlu0 0
        %1045 = vperm.xlu0 %1044, %v1031
        %v1046 = vpop.permute.xlu0 %1045
        %1048 = vset.pattern.permute.xlu0 0
        %1049 = vperm.xlu0 %1048, %v1035
        %v1050 = vpop.permute.xlu0 %1049
        %1052 = vset.pattern.permute.xlu0 0
        %1053 = vperm.xlu0 %1052, %v1039
        %v1054 = vpop.permute.xlu0 %1053
        %v1056 = vmul.f32 %v1042, %v938
        %v1057 = vmul.f32 %v1042, %v943
        %v1058 = vmul.f32 %v1042, %v948
        %v1059 = vmul.f32 %v1042, %v953
        %v1060 = vmul.f32 %v1046, %v958
        %v1061 = vmul.f32 %v1046, %v963
        %v1062 = vmul.f32 %v1046, %v968
        %v1063 = vmul.f32 %v1046, %v973
        %v1064 = vmul.f32 %v1050, %v978
        %v1065 = vmul.f32 %v1050, %v983
        %v1066 = vmul.f32 %v1050, %v988
        %v1067 = vmul.f32 %v1050, %v993
        %v1068 = vmul.f32 %v1054, %v998
        %v1069 = vmul.f32 %v1054, %v1003
        %v1070 = vmul.f32 %v1054, %v1008
        %v1071 = vmul.f32 %v1054, %v1013
        %v1072 = vadd.f32 %v525, %v1056
        %v1073 = vadd.f32 %v530, %v1057
        %v1074 = vadd.f32 %v535, %v1058
        %v1075 = vadd.f32 %v540, %v1059
        %v1076 = vadd.f32 %v545, %v1060
        %v1077 = vadd.f32 %v550, %v1061
        %v1078 = vadd.f32 %v555, %v1062
        %v1079 = vadd.f32 %v560, %v1063
        %v1080 = vadd.f32 %v565, %v1064
        %v1081 = vadd.f32 %v570, %v1065
        %v1082 = vadd.f32 %v575, %v1066
        %v1083 = vadd.f32 %v580, %v1067
        %v1084 = vadd.f32 %v585, %v1068
        %v1085 = vadd.f32 %v590, %v1069
        %v1086 = vadd.f32 %v595, %v1070
        %v1087 = vadd.f32 %v600, %v1071
        %1088 = vst [vmem:[%s380] sm:$0xff] %v1072
        %1089 = vst [vmem:[%s380 + $0x8] sm:$0xff] %v1073
        %1090 = vst [vmem:[%s380 + $0x10] sm:$0xff] %v1074
        %1091 = vst [vmem:[%s380 + $0x18] sm:$0xff] %v1075
        %1092 = vst [vmem:[%s380 + $0x20] sm:$0xff] %v1076
        %1093 = vst [vmem:[%s380 + $0x28] sm:$0xff] %v1077
        %1094 = vst [vmem:[%s380 + $0x30] sm:$0xff] %v1078
        %1095 = vst [vmem:[%s380 + $0x38] sm:$0xff] %v1079
        %1096 = vst [vmem:[%s380 + $0x40] sm:$0xff] %v1080
        %1097 = vst [vmem:[%s380 + $0x48] sm:$0xff] %v1081
        %1098 = vst [vmem:[%s380 + $0x50] sm:$0xff] %v1082
        %1099 = vst [vmem:[%s380 + $0x58] sm:$0xff] %v1083
        %1100 = vst [vmem:[%s380 + $0x60] sm:$0xff] %v1084
        %1101 = vst [vmem:[%s380 + $0x68] sm:$0xff] %v1085
        %1102 = vst [vmem:[%s380 + $0x70] sm:$0xff] %v1086
        %1103 = vst [vmem:[%s380 + $0x78] sm:$0xff] %v1087
        %s1104 = smul.u32 4, %s21
        %p1105 = scmp.lt.s32.totalorder %s1104, 7
        %s1106 = scalar_select %p1105, %s1104, 7
        %s1107 = smul.addr %s1106, 4
        %s1108 = smul.addr %s1107, 8
        %s1109 = scalar_lea.vmem %s8, %s1108
        // Predicated region
        $region61: #{joint_bert_heads_forward.1} parent=51 // pred_check
          %p1110 = pneg %p222
        $region62: #{joint_bert_heads_forward.1} parent=51 // pred_check_branch
          %1112 = sbr.rel (%p1110) target = $region64
        $region63: #{joint_bert_heads_forward.1} parent=51 // pred_region
          %s1113 = smul.u32 4, %s21
        $region64: #{joint_bert_heads_forward.1} parent=51 // pred_fallthru
          _
      $region52: #{joint_bert_heads_forward.1} parent=5 // pred_fallthru
        _
      %p1114 = scmp.le.s32.totalorder 2, %s16
      // Predicated region
      $region65: #{joint_bert_heads_forward.1} parent=5 // pred_check
        %p1115 = pneg %p1114
      $region66: #{joint_bert_heads_forward.1} parent=5 // pred_check_branch
        %1117 = sbr.rel (%p1115) target = $region68
      $region67: #{joint_bert_heads_forward.1} parent=5 // pred_region
        %s1118 = ssub.s32 %s16, 2
        // Predicated region
        $region69: #{joint_bert_heads_forward.1} parent=67 // pred_check
          %p1119 = pneg %p228
        $region70: #{joint_bert_heads_forward.1} parent=67 // pred_check_branch
          %1121 = sbr.rel (%p1119) target = $region72
        $region71: #{joint_bert_heads_forward.1} parent=67 // pred_region
          %s1122 = smul.u32 4, %s22
          %p1123 = scmp.lt.s32.totalorder %s1122, 7
          %s1124 = scalar_select %p1123, %s1122, 7
          %s1125 = smul.addr %s1124, 4
          %s1126 = smul.addr %s1125, 8
          %s1127 = scalar_lea.vmem %s8, %s1126
        $region72: #{joint_bert_heads_forward.1} parent=67 // pred_fallthru
          _
      $region68: #{joint_bert_heads_forward.1} parent=5 // pred_fallthru
        _
    $region6: #{joint_bert_heads_forward.1} parent=1 // loop_footer
      %s20 = sadd.s32 1, %s16
    $region7: #{joint_bert_heads_forward.1} parent=1 // loop_footer_branch
      %15 = sbr.rel target = $region3
    $region8: #{joint_bert_heads_forward.1} parent=1 // loop_exit
      _
    %1128 = vsyncpa [#allocation3], 1
    %s1129 = scalar_lea.sflag [#allocation3], 1
    %1130 = vsyncpa %s1129, 1
    %1131 = vsyncpa [#allocation5], 1

</llo_original>
